<compile_context>
chip_gen: v5e
topology: v5e:2x2
jax: 0.10.0
libtpu: 0.0.40
codegen_flags: <defaults>
</compile_context>

<pallas_src>
import jax
import jax.numpy as jnp
from jax.experimental import pallas as pl
from jax.experimental.pallas import tpu as pltpu

LANE = 128


def _cdiv(a, b):
    return (a + b - 1) // b


def _round_up(x, m):
    return _cdiv(x, m) * m


def _fused_actor_critic_kernel(x_ref, w_ref, b_ref, out_ref):
    """x_ref: (tb, din); w_ref: (3, S, S); b_ref: (3, 1, S) f32; out_ref: (tb, out_w) f32."""
    wdt = w_ref.dtype
    din = x_ref.shape[1]
    out_w = out_ref.shape[1]

    # layer 1: contract only the real feature rows of the packed slab
    x = x_ref[...].astype(wdt)
    h = jnp.tanh(
        jnp.dot(x, w_ref[0, :din, :], preferred_element_type=jnp.float32) + b_ref[0])
    # layer 2: block-diagonal packed weight keeps the two heads independent
    h = jnp.tanh(
        jnp.dot(h.astype(wdt), w_ref[1], preferred_element_type=jnp.float32) + b_ref[1])
    # layer 3: full lane-width MXU matmul, store only the useful [mean | value] lanes
    y = jnp.dot(h.astype(wdt), w_ref[2], preferred_element_type=jnp.float32) + b_ref[2]
    out_ref[...] = y[:, :out_w].astype(out_ref.dtype)


def make_params(key, obs_dim, action_dim, hidden=64, dtype=jnp.float32):
    """Deterministic synthetic parameters (same shapes as MLPNet's Linear layers)."""
    ks = jax.random.split(key, 12)

    def lin(kw, kb, fan_in, fan_out):
        bound = 1.0 / jnp.sqrt(fan_in)
        w = jax.random.uniform(kw, (fan_in, fan_out), dtype, -bound, bound)
        b = jax.random.uniform(kb, (1, fan_out), dtype, -bound, bound)
        return w, b

    aw1, ab1 = lin(ks[0], ks[1], obs_dim, hidden)
    aw2, ab2 = lin(ks[2], ks[3], hidden, hidden)
    aw3, ab3 = lin(ks[4], ks[5], hidden, action_dim)
    cw1, cb1 = lin(ks[6], ks[7], obs_dim, hidden)
    cw2, cb2 = lin(ks[8], ks[9], hidden, hidden)
    cw3, cb3 = lin(ks[10], ks[11], hidden, 1)
    return (aw1, ab1, aw2, ab2, aw3, ab3, cw1, cb1, cw2, cb2, cw3, cb3)


def pack_params(params, obs_dim, action_dim, hidden, compute_dtype=jnp.bfloat16):
    """Pack the 12 actor/critic tensors into one weight slab + one bias slab.

    Done once outside the hot path. Zero padding keeps the math exact.
    bf16 operands are fine on v5e/v6e/v7x: the MXU accumulates in f32 and the
    bias-add / tanh path stays f32.  Returns (w_slab [3,S,S], b_slab [3,1,S] f32, S).
    """
    (aw1, ab1, aw2, ab2, aw3, ab3, cw1, cb1, cw2, cb2, cw3, cb3) = params
    hp = _round_up(2 * hidden, LANE)      # packed hidden lane width (128 for hidden=64)
    din = _round_up(obs_dim, LANE)        # slab rows needed for layer 1
    s = max(din, hp, LANE)                # one square slab size

    w = jnp.zeros((3, s, s), jnp.float32)
    b = jnp.zeros((3, 1, s), jnp.float32)

    # layer 1: actor W1 | critic W1 side by side on lanes; rows >= obs_dim stay zero
    w = w.at[0, :obs_dim, :hidden].set(aw1)
    w = w.at[0, :obs_dim, hidden:2 * hidden].set(cw1)
    b = b.at[0, 0, :hidden].set(ab1[0])
    b = b.at[0, 0, hidden:2 * hidden].set(cb1[0])

    # layer 2: block-diagonal
    w = w.at[1, :hidden, :hidden].set(aw2)
    w = w.at[1, hidden:2 * hidden, hidden:2 * hidden].set(cw2)
    b = b.at[1, 0, :hidden].set(ab2[0])
    b = b.at[1, 0, hidden:2 * hidden].set(cb2[0])

    # layer 3: columns [0:action_dim] = actor mean, column action_dim = critic value
    w = w.at[2, :hidden, :action_dim].set(aw3)
    w = w.at[2, hidden:2 * hidden, action_dim:action_dim + 1].set(cw3)
    b = b.at[2, 0, :action_dim].set(ab3[0])
    b = b.at[2, 0, action_dim:action_dim + 1].set(cb3[0])

    return w.astype(compute_dtype), b, s


def _pick_batch_tiling(B, sub, tb_max):
    """Choose (tb, b_pad): >=2 tiles when possible (v7x has 2 TensorCores) and a
    tile that divides the padded batch with minimal waste."""
    b_aligned = _round_up(max(B, 1), sub)
    min_tiles = 2 if b_aligned >= 2 * sub else 1
    n_tiles = max(_cdiv(b_aligned, tb_max), min_tiles)
    tb = min(_round_up(_cdiv(b_aligned, n_tiles), sub), tb_max)
    b_pad = tb * _cdiv(b_aligned, tb)
    return tb, b_pad


def actor_critic_forward(x, packed, action_dim, action_std=1.0, tb_max=1024):
    """Returns (value, (action_mean, action_std_array)) like the torch forward.
    The Normal distribution object is represented by its (mean, std) tensors."""
    w_slab, b_slab, s = packed
    compute_dtype = w_slab.dtype
    B, obs_dim = x.shape

    din = _round_up(obs_dim, 8)           # sublane-aligned real feature width
    out_w = _round_up(action_dim + 1, 8)  # [mean | value | small zero pad]
    assert din <= s and out_w <= s

    sub = 16 if compute_dtype == jnp.bfloat16 else 8
    tb, b_pad = _pick_batch_tiling(B, sub, max(_round_up(tb_max, sub), sub))
    grid = (b_pad // tb,)

    # Only materialize a padded/cast copy of x when actually required; zero W1
    # rows >= obs_dim neutralize any feature padding, padded batch rows are
    # sliced off below.
    need_pad = (b_pad != B) or (din != obs_dim)
    if need_pad:
        x_in = jnp.zeros((b_pad, din), compute_dtype).at[:B, :obs_dim].set(
            x.astype(compute_dtype))
    else:
        x_in = x  # kernel casts to the weight dtype on the fly (hidden behind DMA)

    flops = 2 * b_pad * s * (din + 2 * s) + 3 * b_pad * s
    bytes_accessed = (
        x_in.size * x_in.dtype.itemsize
        + w_slab.size * w_slab.dtype.itemsize
        + b_slab.size * b_slab.dtype.itemsize
        + b_pad * out_w * 4)

    out = pl.pallas_call(
        _fused_actor_critic_kernel,
        out_shape=jax.ShapeDtypeStruct((b_pad, out_w), jnp.float32),
        grid=grid,
        in_specs=[
            pl.BlockSpec((tb, din), lambda i: (i, 0)),       # batch tile streams
            pl.BlockSpec((3, s, s), lambda i: (0, 0, 0)),    # weight slab resident
            pl.BlockSpec((3, 1, s), lambda i: (0, 0, 0)),    # bias slab resident
        ],
        out_specs=pl.BlockSpec((tb, out_w), lambda i: (i, 0)),
        compiler_params=pltpu.CompilerParams(
            dimension_semantics=("parallel",),
            vmem_limit_bytes=32 * 1024 * 1024),
        cost_estimate=pl.CostEstimate(
            flops=flops,
            transcendentals=2 * b_pad * s,
            bytes_accessed=bytes_accessed),
    )(x_in, w_slab, b_slab)

    mean = out[:B, :action_dim]
    value = out[:B, action_dim:action_dim + 1]
    # TODO(synk): torch.distributions.Normal has no Pallas equivalent; the
    # distribution is returned as its (mean, std) tensors for the caller.
    std = jnp.full_like(mean, action_std)
    return value, (mean, std)


if __name__ == "__main__":
    key = jax.random.PRNGKey(0)
    k_x, k_x2, k_p = jax.random.split(key, 3)

    B, OBS_DIM, ACTION_DIM, HIDDEN = 8, 32, 4, 64
    x = jax.random.normal(k_x, (B, OBS_DIM), jnp.float32)
    params = make_params(k_p, OBS_DIM, ACTION_DIM, hidden=HIDDEN)

    # plain-JAX reference of the same math
    def ref_mlp(x, w1, b1, w2, b2, w3, b3):
        h = jnp.tanh(x @ w1 + b1)
        h = jnp.tanh(h @ w2 + b2)
        return h @ w3 + b3

    ref_mean = ref_mlp(x, *params[:6])
    ref_value = ref_mlp(x, *params[6:])

    # ---- default path: bf16 MXU operands, f32 accumulation / bias / tanh ----
    packed = pack_params(params, OBS_DIM, ACTION_DIM, HIDDEN)
    value, (mean, std) = actor_critic_forward(x, packed, ACTION_DIM, action_std=1.0)
    jax.block_until_ready((value, mean, std))
    assert mean.shape == (B, ACTION_DIM) and value.shape == (B, 1)
    assert std.shape == mean.shape
    assert jnp.allclose(std, 1.0)
    assert jnp.allclose(mean, ref_mean, atol=1e-1, rtol=1e-1)
    assert jnp.allclose(value, ref_value, atol=1e-1, rtol=1e-1)

    # ---- f32 operands: exactness check of the packing / fusion ----
    packed_f32 = pack_params(params, OBS_DIM, ACTION_DIM, HIDDEN, jnp.float32)
    value_f, (mean_f, _) = actor_critic_forward(x, packed_f32, ACTION_DIM)
    jax.block_until_ready((value_f, mean_f))
    assert jnp.allclose(mean_f, ref_mean, atol=1e-5, rtol=1e-5)
    assert jnp.allclose(value_f, ref_value, atol=1e-5, rtol=1e-5)

    # ---- multi-tile batch grid (exercises padding + parallel grid + small tb) ----
    B2 = 48
    x2 = jax.random.normal(k_x2, (B2, OBS_DIM), jnp.float32)
    value2, (mean2, _) = actor_critic_forward(x2, packed_f32, ACTION_DIM, tb_max=16)
    jax.block_until_ready((value2, mean2))
    assert jnp.allclose(mean2, ref_mlp(x2, *params[:6]), atol=1e-5, rtol=1e-5)
    assert jnp.allclose(value2, ref_mlp(x2, *params[6:]), atol=1e-5, rtol=1e-5)

    # ---- bf16 default path on the multi-tile batch ----
    value3, (mean3, _) = actor_critic_forward(x2, packed, ACTION_DIM)
    jax.block_until_ready((value3, mean3))
    assert jnp.allclose(mean3, ref_mlp(x2, *params[:6]), atol=1e-1, rtol=1e-1)
    assert jnp.allclose(value3, ref_mlp(x2, *params[6:]), atol=1e-1, rtol=1e-1)

    print("KERNEL_OK")
</pallas_src>

<mosaic_0001>
module attributes {stable_mosaic.version = 11 : i64} {
  func.func @_fused_actor_critic_kernel(%arg0: i32, %arg1: memref<16x32xbf16, #tpu.memory_space<vmem>>, %arg2: memref<3x128x128xbf16, #tpu.memory_space<vmem>>, %arg3: memref<3x1x128xf32, #tpu.memory_space<vmem>>, %arg4: memref<16x8xf32, #tpu.memory_space<vmem>>) attributes {dimension_semantics = [#tpu.dimension_semantics<parallel>], iteration_bounds = array<i64: 1>, scalar_prefetch = 0 : i64, scratch_operands = 0 : i64, tpu.core_type = #tpu.core_type<tc>, window_params = [{transform_indices = @transform_0, window_bounds = array<i64: 16, 32>}, {pipeline_mode = #tpu.pipeline_mode<synchronous>, transform_indices = @transform_1, window_bounds = array<i64: 3, 128, 128>}, {pipeline_mode = #tpu.pipeline_mode<synchronous>, transform_indices = @transform_2, window_bounds = array<i64: 3, 1, 128>}, {transform_indices = @transform_3, window_bounds = array<i64: 16, 8>}]} {
    %c0 = arith.constant 0 : index
    %c0_0 = arith.constant 0 : index
    %0 = vector.load %arg1[%c0, %c0_0] : memref<16x32xbf16, #tpu.memory_space<vmem>>, vector<16x32xbf16>
    %c0_1 = arith.constant 0 : index
    %c0_2 = arith.constant 0 : index
    %c0_3 = arith.constant 0 : index
    %1 = vector.load %arg2[%c0_1, %c0_2, %c0_3] : memref<3x128x128xbf16, #tpu.memory_space<vmem>>, vector<1x32x128xbf16>
    %2 = vector.shape_cast %1 : vector<1x32x128xbf16> to vector<32x128xbf16>
    %cst = arith.constant dense<0.000000e+00> : vector<16x128xf32>
    %3 = tpu.matmul %0, %2, %cst {dimension_numbers = #tpu.dot_dimension_numbers<[1], [0], [0], [1], [0, 0, 1, 1], [], []>} : vector<16x32xbf16>, vector<32x128xbf16>, vector<16x128xf32> -> vector<16x128xf32>
    %c0_4 = arith.constant 0 : index
    %c0_5 = arith.constant 0 : index
    %c0_6 = arith.constant 0 : index
    %4 = vector.load %arg3[%c0_4, %c0_5, %c0_6] : memref<3x1x128xf32, #tpu.memory_space<vmem>>, vector<1x1x128xf32>
    %5 = vector.shape_cast %4 : vector<1x1x128xf32> to vector<1x128xf32>
    %6 = vector.broadcast %5 : vector<1x128xf32> to vector<16x128xf32>
    %7 = arith.addf %3, %6 : vector<16x128xf32>
    %8 = math.tanh %7 : vector<16x128xf32>
    %9 = arith.truncf %8 : vector<16x128xf32> to vector<16x128xbf16>
    %c1 = arith.constant 1 : index
    %c0_7 = arith.constant 0 : index
    %c0_8 = arith.constant 0 : index
    %10 = vector.load %arg2[%c1, %c0_7, %c0_8] : memref<3x128x128xbf16, #tpu.memory_space<vmem>>, vector<1x128x128xbf16>
    %11 = vector.shape_cast %10 : vector<1x128x128xbf16> to vector<128x128xbf16>
    %cst_9 = arith.constant dense<0.000000e+00> : vector<16x128xf32>
    %12 = tpu.matmul %9, %11, %cst_9 {dimension_numbers = #tpu.dot_dimension_numbers<[1], [0], [0], [1], [0, 0, 1, 1], [], []>} : vector<16x128xbf16>, vector<128x128xbf16>, vector<16x128xf32> -> vector<16x128xf32>
    %c1_10 = arith.constant 1 : index
    %c0_11 = arith.constant 0 : index
    %c0_12 = arith.constant 0 : index
    %13 = vector.load %arg3[%c1_10, %c0_11, %c0_12] : memref<3x1x128xf32, #tpu.memory_space<vmem>>, vector<1x1x128xf32>
    %14 = vector.shape_cast %13 : vector<1x1x128xf32> to vector<1x128xf32>
    %15 = vector.broadcast %14 : vector<1x128xf32> to vector<16x128xf32>
    %16 = arith.addf %12, %15 : vector<16x128xf32>
    %17 = math.tanh %16 : vector<16x128xf32>
    %18 = arith.truncf %17 : vector<16x128xf32> to vector<16x128xbf16>
    %c2 = arith.constant 2 : index
    %c0_13 = arith.constant 0 : index
    %c0_14 = arith.constant 0 : index
    %19 = vector.load %arg2[%c2, %c0_13, %c0_14] : memref<3x128x128xbf16, #tpu.memory_space<vmem>>, vector<1x128x128xbf16>
    %20 = vector.shape_cast %19 : vector<1x128x128xbf16> to vector<128x128xbf16>
    %cst_15 = arith.constant dense<0.000000e+00> : vector<16x128xf32>
    %21 = tpu.matmul %18, %20, %cst_15 {dimension_numbers = #tpu.dot_dimension_numbers<[1], [0], [0], [1], [0, 0, 1, 1], [], []>} : vector<16x128xbf16>, vector<128x128xbf16>, vector<16x128xf32> -> vector<16x128xf32>
    %c2_16 = arith.constant 2 : index
    %c0_17 = arith.constant 0 : index
    %c0_18 = arith.constant 0 : index
    %22 = vector.load %arg3[%c2_16, %c0_17, %c0_18] : memref<3x1x128xf32, #tpu.memory_space<vmem>>, vector<1x1x128xf32>
    %23 = vector.shape_cast %22 : vector<1x1x128xf32> to vector<1x128xf32>
    %24 = vector.broadcast %23 : vector<1x128xf32> to vector<16x128xf32>
    %25 = arith.addf %21, %24 : vector<16x128xf32>
    %26 = vector.extract_strided_slice %25 {offsets = [0, 0], sizes = [16, 8], strides = [1, 1]} : vector<16x128xf32> to vector<16x8xf32>
    %c0_19 = arith.constant 0 : index
    %c0_20 = arith.constant 0 : index
    %27 = vector.load %arg4[%c0_19, %c0_20] : memref<16x8xf32, #tpu.memory_space<vmem>>, vector<16x8xf32>
    tpu.vector_store %arg4[%c0_19, %c0_20], %26 {strides = array<i32>} : memref<16x8xf32, #tpu.memory_space<vmem>>, vector<16x8xf32>,
    return
  }
  func.func @transform_0(%arg0: i32) -> (i32, i32) {
    %c0_i32 = arith.constant 0 : i32
    %c0_i32_0 = arith.constant 0 : i32
    return %arg0, %c0_i32 : i32, i32
  }
  func.func @transform_1(%arg0: i32) -> (i32, i32, i32) {
    %c0_i32 = arith.constant 0 : i32
    %c0_i32_0 = arith.constant 0 : i32
    %c0_i32_1 = arith.constant 0 : i32
    %c0_i32_2 = arith.constant 0 : i32
    return %c0_i32, %c0_i32_0, %c0_i32_1 : i32, i32, i32
  }
  func.func @transform_2(%arg0: i32) -> (i32, i32, i32) {
    %c0_i32 = arith.constant 0 : i32
    %c0_i32_0 = arith.constant 0 : i32
    %c0_i32_1 = arith.constant 0 : i32
    %c0_i32_2 = arith.constant 0 : i32
    return %c0_i32, %c0_i32_0, %c0_i32_1 : i32, i32, i32
  }
  func.func @transform_3(%arg0: i32) -> (i32, i32) {
    %c0_i32 = arith.constant 0 : i32
    %c0_i32_0 = arith.constant 0 : i32
    return %arg0, %c0_i32 : i32, i32
  }
}

</mosaic_0001>

<llo_original>
// kernel: tpu_custom_call.1
$region0: #{tpu_custom_call.1}
  #allocation0 [shape = 'u32[]', space=smem, size = 0x4, offset = 0x4, fixed_abs, tag = 'smem constant byte address 0x4 - core index']
  #allocation1 [shape = 'u32[72,128]{1,0:T(1,128)}', space=vmem, size = 0x9000, scoped, tag = 'internal scratch']
  %s0 = inlined_call_operand.hbm [shape: bf16[16,32], index: 0, kind: input, shape index: {}]
  %s1 = inlined_call_operand.hbm [shape: bf16[3,128,128], index: 1, kind: input, shape index: {}]
  %s2 = inlined_call_operand.hbm [shape: f32[3,1,128], index: 2, kind: input, shape index: {}]
  %s3 = inlined_call_operand.vmem [shape: f32[16,8], index: 3, kind: output, shape index: {}]
  %s4 = sld [smem:[#allocation0]]
  $region34: #{tpu_custom_call.1} parent=0
    _
  %s6 = ssub.s32 1, %s4
  %s7 = scalar_select 0, %s6, %s4
  $region1: #{tpu_custom_call.1} parent=0
    #allocation2 [shape = 'u8[4096]{0}', space=vmem, size = 0x1000, scoped, tag = 'input window, operand 0, single buffered']
    #allocation3 [shape = 's32[1]{0}', space=sflag, size = 0x4, scoped, tag = 'scoped memory for tpu_custom_call.1']
    #allocation4 [shape = 'u8[98304]{0}', space=vmem, size = 0x18000, scoped, tag = 'input window, operand 1, single buffered']
    #allocation5 [shape = 's32[1]{0}', space=sflag, size = 0x4, scoped, tag = 'scoped memory for tpu_custom_call.1']
    #allocation6 [shape = 'u8[1536]{0}', space=vmem, size = 0x800, scoped, tag = 'input window, operand 2, single buffered']
    %8 = vsyncpa [#allocation3], 0
    %9 = vsyncpa [#allocation5], 0
    // Predicated region
    $region2: #{tpu_custom_call.1} parent=1 // pred_check
      _
    $region3: #{tpu_custom_call.1} parent=1 // pred_check_branch
      %11 = sbr.rel (0) target = $region5
    $region4: #{tpu_custom_call.1} parent=1 // pred_region
      %13 = vsyncadd [#allocation3], 0
      %s14 = sshll.u32 %s0, 4
      %s15 = int_to_ptr.hbm [resolvable:$true] %s14
      %s16 = sshll.u32 [#allocation2], 4
      %s17 = int_to_ptr.vmem [resolvable:$true] %s16
      %22 = dma.hbm_to_vmem [thread:$0]  %s15, 128, %s17, [#allocation3], 64, 64, 4
    $region5: #{tpu_custom_call.1} parent=1 // pred_fallthru
      _
    // Predicated region
    $region6: #{tpu_custom_call.1} parent=1 // pred_check
      _
    $region7: #{tpu_custom_call.1} parent=1 // pred_check_branch
      %24 = sbr.rel (0) target = $region9
    $region8: #{tpu_custom_call.1} parent=1 // pred_region
      %26 = vsyncadd [#allocation5], 0
      %s27 = sshll.u32 %s1, 4
      %s28 = int_to_ptr.hbm [resolvable:$true] %s27
      %s29 = sshll.u32 [#allocation4], 4
      %s30 = int_to_ptr.vmem [resolvable:$true] %s29
      %35 = dma.hbm_to_vmem [thread:$0]  %s28, 3072, %s30, [#allocation5], 64, 64, 4
    $region9: #{tpu_custom_call.1} parent=1 // pred_fallthru
      _
    // Predicated region
    $region10: #{tpu_custom_call.1} parent=1 // pred_check
      _
    $region11: #{tpu_custom_call.1} parent=1 // pred_check_branch
      %37 = sbr.rel (0) target = $region13
    $region12: #{tpu_custom_call.1} parent=1 // pred_region
      %39 = vsyncadd [#allocation5], 0
      %s40 = sshll.u32 %s2, 4
      %s41 = int_to_ptr.hbm [resolvable:$true] %s40
      %s42 = sshll.u32 [#allocation6], 4
      %s43 = int_to_ptr.vmem [resolvable:$true] %s42
      %48 = dma.hbm_to_vmem [thread:$0]  %s41, 48, %s43, [#allocation5], 16, 16, 1
    $region13: #{tpu_custom_call.1} parent=1 // pred_fallthru
      _
    // Predicated region
    $region14: #{tpu_custom_call.1} parent=1 // pred_check
      _
    $region15: #{tpu_custom_call.1} parent=1 // pred_check_branch
      %50 = sbr.rel (0) target = $region17
    $region16: #{tpu_custom_call.1} parent=1 // pred_region
      %52 = dma.done [#allocation3], 128
    $region17: #{tpu_custom_call.1} parent=1 // pred_fallthru
      _
    // Predicated region
    $region18: #{tpu_custom_call.1} parent=1 // pred_check
      _
    $region19: #{tpu_custom_call.1} parent=1 // pred_check_branch
      %54 = sbr.rel (0) target = $region21
    $region20: #{tpu_custom_call.1} parent=1 // pred_region
      %56 = dma.done [#allocation5], 3072
    $region21: #{tpu_custom_call.1} parent=1 // pred_fallthru
      _
    // Predicated region
    $region22: #{tpu_custom_call.1} parent=1 // pred_check
      _
    $region23: #{tpu_custom_call.1} parent=1 // pred_check_branch
      %58 = sbr.rel (0) target = $region25
    $region24: #{tpu_custom_call.1} parent=1 // pred_region
      %60 = dma.done [#allocation5], 48
    $region25: #{tpu_custom_call.1} parent=1 // pred_fallthru
      _
    %v62 = vld [vmem:[#allocation2] sm:$0xf]
    %v63 = vld [vmem:[#allocation2 + $0x4] sm:$0xf]
    %v64 = vld [vmem:[#allocation4] sm:$0xf]
    %v65 = vld [vmem:[#allocation4 + $0x4] sm:$0xf]
    %v66 = vld [vmem:[#allocation4 + $0x8] sm:$0xf]
    %v67 = vld [vmem:[#allocation4 + $0xc] sm:$0xf]
    %v68 = vld [vmem:[#allocation6] sm:$0x1]
    %v70 = vperm.slane %v68, 0
    %v74 = vunpack.c.l.b16 %v62
    %v75 = vunpack.c.l.b16 %v63
    %v76 = vpack.c.b16 %v75, %v74
    %v81 = vunpack.c.l.b16 %v64
    %v82 = vunpack.c.l.b16 %v65
    %v83 = vunpack.c.l.b16 %v66
    %v84 = vunpack.c.l.b16 %v67
    %v85 = vpack.c.b16 %v82, %v81
    %v86 = vpack.c.b16 %v84, %v83
    %vm89 = vcmask 261120
    %v91 = vsel %vm89, %v76, 0
    %93 = vmatpush.bf16.msra.mxu0 0
    %94 = vmatpush.bf16.msra.mxu0 0
    %95 = vmatpush.bf16.msra.mxu0 0
    %96 = vmatpush.bf16.msra.mxu0 0
    %97 = vmatpush.bf16.msra.mxu0 0
    %98 = vmatpush.bf16.msra.mxu0 0
    %99 = vmatpush.bf16.msra.mxu0 %v86
    %100 = vmatpush.bf16.msra.mxu0 %v85
    %101 = vmatmul.bf16.gmra.mxu0 %v91
    %v102 = vpop.f32.mrf.mxu0
    %v103 = vadd.f32 %v70, %v102
    %v104 = vpop.f32.mrf.mxu0
    %v105 = vadd.f32 %v70, %v104
    %106 = vdwg.mxu0
    %v107 = vtanh.pop %v103
    %v108 = vtanh.pop %v105
    %v109 = vpack.c.bf16 %v108, %v107
    %s110 = scalar_lea.vmem [#allocation4], 64
    %v111 = vld [vmem:[%s110] sm:$0xf]
    %v112 = vld [vmem:[%s110 + $0x4] sm:$0xf]
    %v113 = vld [vmem:[%s110 + $0x8] sm:$0xf]
    %v114 = vld [vmem:[%s110 + $0xc] sm:$0xf]
    %v115 = vld [vmem:[%s110 + $0x10] sm:$0xf]
    %v116 = vld [vmem:[%s110 + $0x14] sm:$0xf]
    %v117 = vld [vmem:[%s110 + $0x18] sm:$0xf]
    %v118 = vld [vmem:[%s110 + $0x1c] sm:$0xf]
    %v119 = vld [vmem:[%s110 + $0x20] sm:$0xf]
    %v120 = vld [vmem:[%s110 + $0x24] sm:$0xf]
    %v121 = vld [vmem:[%s110 + $0x28] sm:$0xf]
    %v122 = vld [vmem:[%s110 + $0x2c] sm:$0xf]
    %v123 = vld [vmem:[%s110 + $0x30] sm:$0xf]
    %v124 = vld [vmem:[%s110 + $0x34] sm:$0xf]
    %v125 = vld [vmem:[%s110 + $0x38] sm:$0xf]
    %v126 = vld [vmem:[%s110 + $0x3c] sm:$0xf]
    %s127 = scalar_lea.vmem [#allocation6], 1
    %v128 = vld [vmem:[%s127] sm:$0x1]
    %v130 = vperm.slane %v128, 0
    %v148 = vunpack.c.l.b16 %v111
    %v149 = vunpack.c.l.b16 %v112
    %v150 = vunpack.c.l.b16 %v113
    %v151 = vunpack.c.l.b16 %v114
    %v152 = vunpack.c.l.b16 %v115
    %v153 = vunpack.c.l.b16 %v116
    %v154 = vunpack.c.l.b16 %v117
    %v155 = vunpack.c.l.b16 %v118
    %v156 = vunpack.c.l.b16 %v119
    %v157 = vunpack.c.l.b16 %v120
    %v158 = vunpack.c.l.b16 %v121
    %v159 = vunpack.c.l.b16 %v122
    %v160 = vunpack.c.l.b16 %v123
    %v161 = vunpack.c.l.b16 %v124
    %v162 = vunpack.c.l.b16 %v125
    %v163 = vunpack.c.l.b16 %v126
    %v164 = vpack.c.b16 %v149, %v148
    %v165 = vpack.c.b16 %v151, %v150
    %v166 = vpack.c.b16 %v153, %v152
    %v167 = vpack.c.b16 %v155, %v154
    %v168 = vpack.c.b16 %v157, %v156
    %v169 = vpack.c.b16 %v159, %v158
    %v170 = vpack.c.b16 %v161, %v160
    %v171 = vpack.c.b16 %v163, %v162
    %180 = vmatpush.bf16.msra.mxu0 %v171
    %181 = vmatpush.bf16.msra.mxu0 %v170
    %182 = vmatpush.bf16.msra.mxu0 %v169
    %183 = vmatpush.bf16.msra.mxu0 %v168
    %184 = vmatpush.bf16.msra.mxu0 %v167
    %185 = vmatpush.bf16.msra.mxu0 %v166
    %186 = vmatpush.bf16.msra.mxu0 %v165
    %187 = vmatpush.bf16.msra.mxu0 %v164
    %188 = vmatmul.bf16.gmra.mxu0 %v109
    %v189 = vpop.f32.mrf.mxu0
    %v190 = vadd.f32 %v130, %v189
    %v191 = vpop.f32.mrf.mxu0
    %v192 = vadd.f32 %v130, %v191
    %193 = vdwg.mxu0
    %v194 = vtanh.pop %v190
    %v195 = vtanh.pop %v192
    %v196 = vpack.c.bf16 %v195, %v194
    %s197 = scalar_lea.vmem [#allocation4], 128
    %v198 = vld [vmem:[%s197] sm:$0xf]
    %v199 = vld [vmem:[%s197 + $0x4] sm:$0xf]
    %v200 = vld [vmem:[%s197 + $0x8] sm:$0xf]
    %v201 = vld [vmem:[%s197 + $0xc] sm:$0xf]
    %v202 = vld [vmem:[%s197 + $0x10] sm:$0xf]
    %v203 = vld [vmem:[%s197 + $0x14] sm:$0xf]
    %v204 = vld [vmem:[%s197 + $0x18] sm:$0xf]
    %v205 = vld [vmem:[%s197 + $0x1c] sm:$0xf]
    %v206 = vld [vmem:[%s197 + $0x20] sm:$0xf]
    %v207 = vld [vmem:[%s197 + $0x24] sm:$0xf]
    %v208 = vld [vmem:[%s197 + $0x28] sm:$0xf]
    %v209 = vld [vmem:[%s197 + $0x2c] sm:$0xf]
    %v210 = vld [vmem:[%s197 + $0x30] sm:$0xf]
    %v211 = vld [vmem:[%s197 + $0x34] sm:$0xf]
    %v212 = vld [vmem:[%s197 + $0x38] sm:$0xf]
    %v213 = vld [vmem:[%s197 + $0x3c] sm:$0xf]
    %s214 = scalar_lea.vmem [#allocation6], 2
    %v215 = vld [vmem:[%s214] sm:$0x1]
    %v217 = vperm.slane %v215, 0
    %v235 = vunpack.c.l.b16 %v198
    %v236 = vunpack.c.l.b16 %v199
    %v237 = vunpack.c.l.b16 %v200
    %v238 = vunpack.c.l.b16 %v201
    %v239 = vunpack.c.l.b16 %v202
    %v240 = vunpack.c.l.b16 %v203
    %v241 = vunpack.c.l.b16 %v204
    %v242 = vunpack.c.l.b16 %v205
    %v243 = vunpack.c.l.b16 %v206
    %v244 = vunpack.c.l.b16 %v207
    %v245 = vunpack.c.l.b16 %v208
    %v246 = vunpack.c.l.b16 %v209
    %v247 = vunpack.c.l.b16 %v210
    %v248 = vunpack.c.l.b16 %v211
    %v249 = vunpack.c.l.b16 %v212
    %v250 = vunpack.c.l.b16 %v213
    %v251 = vpack.c.b16 %v236, %v235
    %v252 = vpack.c.b16 %v238, %v237
    %v253 = vpack.c.b16 %v240, %v239
    %v254 = vpack.c.b16 %v242, %v241
    %v255 = vpack.c.b16 %v244, %v243
    %v256 = vpack.c.b16 %v246, %v245
    %v257 = vpack.c.b16 %v248, %v247
    %v258 = vpack.c.b16 %v250, %v249
    %267 = vmatpush.bf16.msra.mxu0 %v258
    %268 = vmatpush.bf16.msra.mxu0 %v257
    %269 = vmatpush.bf16.msra.mxu0 %v256
    %270 = vmatpush.bf16.msra.mxu0 %v255
    %271 = vmatpush.bf16.msra.mxu0 %v254
    %272 = vmatpush.bf16.msra.mxu0 %v253
    %273 = vmatpush.bf16.msra.mxu0 %v252
    %274 = vmatpush.bf16.msra.mxu0 %v251
    %275 = vmatmul.bf16.gmra.mxu0 %v196
    %v276 = vpop.f32.mrf.mxu0
    %v277 = vadd.f32 %v217, %v276
    %v278 = vpop.f32.mrf.mxu0
    %v279 = vadd.f32 %v217, %v278
    %280 = vdwg.mxu0
    %vm281 = vcmask 64512
    %282 = vst.msk [vmem:[%s3] sm:$0xff] %vm281, %v277
    %283 = vst.msk [vmem:[%s3 + $0x8] sm:$0xff] %vm281, %v279
    // Predicated region
    $region26: #{tpu_custom_call.1} parent=1 // pred_check
      _
    $region27: #{tpu_custom_call.1} parent=1 // pred_check_branch
      %285 = sbr.rel (0) target = $region29
    $region28: #{tpu_custom_call.1} parent=1 // pred_region
      _
    $region29: #{tpu_custom_call.1} parent=1 // pred_fallthru
      _
    // Predicated region
    $region30: #{tpu_custom_call.1} parent=1 // pred_check
      _
    $region31: #{tpu_custom_call.1} parent=1 // pred_check_branch
      %287 = sbr.rel (0) target = $region33
    $region32: #{tpu_custom_call.1} parent=1 // pred_region
      _
    $region33: #{tpu_custom_call.1} parent=1 // pred_fallthru
      _
    %288 = vsyncpa [#allocation3], 1
    %289 = vsyncpa [#allocation5], 1

</llo_original>
